<compile_context>
chip_gen: v5e
topology: v5e:2x2
jax: 0.10.0
libtpu: 0.0.40
codegen_flags: <defaults>
</compile_context>

<pallas_src>
import jax
import jax.numpy as jnp
from jax.experimental import pallas as pl
from jax.experimental.pallas import tpu as pltpu


def _round_up(x, m):
    return (x + m - 1) // m * m


def _round_down(x, m):
    return (x // m) * m


def _nsp_kernel(x_ref, wd_ref, bd_ref, o_ref):
    # x_ref:  (tile_b, h_pad) CLS activations, native dtype (VMEM)
    # wd_ref: (h_pad, 1)      w[:,1] - w[:,0], pre-cast to x dtype (VMEM, resident)
    # bd_ref: (1,)            b[1] - b[0], f32 (SMEM)
    # o_ref:  (tile_b, 2)     log-probs
    d = jnp.dot(x_ref[...], wd_ref[...], preferred_element_type=jnp.float32)
    d = d + bd_ref[0]                                     # (tile_b, 1) logit diff

    # log_softmax([l0, l1]) == [-softplus(d), d - softplus(d)], d = l1 - l0.
    # Numerically stable softplus: max(d, 0) + log(1 + exp(-|d|)).
    sp = jnp.maximum(d, 0.0) + jnp.log(1.0 + jnp.exp(-jnp.abs(d)))

    col = jax.lax.broadcasted_iota(jnp.int32, (d.shape[0], 2), 1)
    out = jnp.where(col == 0, -sp, d - sp)                # broadcast -> (tile_b, 2)
    o_ref[...] = out.astype(o_ref.dtype)


def next_sentence_prediction(x, weight_t, bias, *, tile_b=None):
    """x: (b, t, h); weight_t: (h, 2) == nn.Linear.weight.T; bias: (2,) -> (b, 2) log-probs."""
    b, t, h = x.shape
    h_pad = _round_up(h, 128)

    # Read CLS rows directly from the full (b, t, h) HBM buffer via the
    # layout-free (b, t*h) reshape; the DMA fetches only the first h_pad
    # lanes of each row.
    if h == h_pad or t * h >= h_pad:
        x_in = x.reshape(b, t * h)
    else:
        # Tiny unaligned case (t*h < round_up(h,128)): the over-read would run
        # past the array, so fall back to a wrapper-side CLS slice.
        x_in = x[:, 0, :]
        h_pad = h

    # 2-class closed form: only the logit difference is needed.
    wd = (weight_t[:, 1] - weight_t[:, 0]).astype(x.dtype)        # (h,)
    if h_pad != h:
        wd = jnp.pad(wd, (0, h_pad - h))                          # zero rows for over-read lanes
    wd = wd.reshape(h_pad, 1)
    bd = (bias[1] - bias[0]).astype(jnp.float32).reshape(1)

    # --- batch tile selection ------------------------------------------------
    row_bytes = h_pad * x.dtype.itemsize
    if tile_b is None:
        # Big tiles amortize the ~0.35us/step overhead; keep >=4 grid steps
        # when the batch allows so the 'parallel' axis shards across both
        # v7x TensorCores.
        tile_b = min(2048, _round_up(pl.cdiv(b, 4), 8))
    # Budget against the tightest scoped-VMEM default (v5e: 16 MiB): x is
    # double-buffered, so cap one x buffer at ~6 MiB.
    vmem_rows = max(8, _round_down((6 * 1024 * 1024) // max(row_bytes, 1), 8))
    tile_b = max(8, min(tile_b, vmem_rows))
    tile_b = min(tile_b, b)
    if tile_b < b and tile_b % 8 != 0:
        tile_b = max(8, _round_down(tile_b, 8))
    grid = (pl.cdiv(b, tile_b),)

    x_spec = pl.BlockSpec((tile_b, h_pad), lambda i: (i, 0))
    w_spec = pl.BlockSpec((h_pad, 1), lambda i: (0, 0))           # resident across steps
    b_spec = pl.BlockSpec(memory_space=pltpu.MemorySpace.SMEM)
    o_spec = pl.BlockSpec((tile_b, 2), lambda i: (i, 0))
    # NOTE: for bf16 inputs / very small h (CLS chunk < ~4 KiB) a 3-deep
    # pipeline (pipeline_mode=pl.Buffered(3) on x_spec) is a worthwhile sweep.

    itemsize = x.dtype.itemsize
    cost = pl.CostEstimate(
        flops=2 * b * h_pad,
        transcendentals=2 * b,
        bytes_accessed=(b * h_pad * itemsize
                        + h_pad * itemsize
                        + 4
                        + b * 2 * itemsize),
    )

    return pl.pallas_call(
        _nsp_kernel,
        out_shape=jax.ShapeDtypeStruct((b, 2), x.dtype),
        grid_spec=pltpu.PrefetchScalarGridSpec(
            num_scalar_prefetch=0,
            grid=grid,
            in_specs=[x_spec, w_spec, b_spec],
            out_specs=o_spec,
        ),
        compiler_params=pltpu.CompilerParams(
            dimension_semantics=("parallel",),
        ),
        cost_estimate=cost,
    )(x_in, wd, bd)


if __name__ == "__main__":
    key = jax.random.PRNGKey(0)
    kx, kw, kb = jax.random.split(key, 3)

    batch, seq, hidden = 32, 8, 128

    x = jax.random.normal(kx, (batch, seq, hidden), dtype=jnp.float32)
    # nn.Linear(hidden, 2): weight (2, hidden), bias (2,).  Pass weight.T.
    weight = jax.random.normal(kw, (2, hidden), dtype=jnp.float32) * 0.02
    bias = jax.random.normal(kb, (2,), dtype=jnp.float32) * 0.02
    weight_t = weight.T  # (hidden, 2)

    # Auto tile_b -> 8-row tiles, 4-step "parallel" grid (exercises pipelining
    # and megacore sharding at this small demo size).
    fn = jax.jit(next_sentence_prediction)
    out = jax.block_until_ready(fn(x, weight_t, bias))

    # Reference (plain JAX, mirrors the PyTorch module).
    ref = jax.nn.log_softmax(x[:, 0] @ weight_t + bias, axis=-1)
    assert out.shape == (batch, 2)
    assert jnp.allclose(out, ref, atol=1e-5, rtol=1e-5)

    print("KERNEL_OK")
</pallas_src>

<mosaic_0001>
module attributes {stable_mosaic.version = 11 : i64} {
  func.func @_nsp_kernel(%arg0: i32, %arg1: memref<8x128xf32, #tpu.memory_space<vmem>>, %arg2: memref<128x1xf32, #tpu.memory_space<vmem>>, %arg3: memref<1xf32, #tpu.memory_space<smem>>, %arg4: memref<8x2xf32, #tpu.memory_space<vmem>>) attributes {dimension_semantics = [#tpu.dimension_semantics<parallel>], iteration_bounds = array<i64: 4>, scalar_prefetch = 0 : i64, scratch_operands = 0 : i64, tpu.core_type = #tpu.core_type<tc>, window_params = [{transform_indices = @transform_0, window_bounds = array<i64: 8, 128>}, {pipeline_mode = #tpu.pipeline_mode<synchronous>, transform_indices = @transform_1, window_bounds = array<i64: 128, 1>}, {transform_indices = @transform_2, window_bounds = array<i64: 1>}, {transform_indices = @transform_3, window_bounds = array<i64: 8, 2>}]} {
    %c0 = arith.constant 0 : index
    %c0_0 = arith.constant 0 : index
    %0 = vector.load %arg1[%c0, %c0_0] : memref<8x128xf32, #tpu.memory_space<vmem>>, vector<8x128xf32>
    %c0_1 = arith.constant 0 : index
    %c0_2 = arith.constant 0 : index
    %1 = vector.load %arg2[%c0_1, %c0_2] : memref<128x1xf32, #tpu.memory_space<vmem>>, vector<128x1xf32>
    %cst = arith.constant dense<0.000000e+00> : vector<8x1xf32>
    %2 = tpu.matmul %0, %1, %cst {dimension_numbers = #tpu.dot_dimension_numbers<[1], [0], [0], [1], [0, 0, 1, 1], [], []>} : vector<8x128xf32>, vector<128x1xf32>, vector<8x1xf32> -> vector<8x1xf32>
    %c0_3 = arith.constant 0 : index
    %3 = memref.load %arg3[%c0_3] : memref<1xf32, #tpu.memory_space<smem>>
    %4 = vector.broadcast %3 : f32 to vector<8x1xf32>
    %5 = arith.addf %2, %4 : vector<8x1xf32>
    %cst_4 = arith.constant 0.000000e+00 : f32
    %6 = vector.broadcast %cst_4 : f32 to vector<8x1xf32>
    %7 = arith.maximumf %5, %6 : vector<8x1xf32>
    %8 = math.absf %5 : vector<8x1xf32>
    %cst_5 = arith.constant 0.000000e+00 : f32
    %9 = vector.broadcast %cst_5 : f32 to vector<8x1xf32>
    %10 = arith.subf %9, %8 : vector<8x1xf32>
    %11 = math.exp %10 : vector<8x1xf32>
    %cst_6 = arith.constant 1.000000e+00 : f32
    %12 = vector.broadcast %cst_6 : f32 to vector<8x1xf32>
    %13 = arith.addf %12, %11 : vector<8x1xf32>
    %14 = math.log %13 : vector<8x1xf32>
    %15 = arith.addf %7, %14 : vector<8x1xf32>
    %16 = tpu.iota {dimensions = array<i32: 1>} : vector<8x2xi32>
    %c0_i32 = arith.constant 0 : i32
    %17 = vector.broadcast %c0_i32 : i32 to vector<8x2xi32>
    %18 = arith.cmpi eq, %16, %17 : vector<8x2xi32>
    %cst_7 = arith.constant 0.000000e+00 : f32
    %19 = vector.broadcast %cst_7 : f32 to vector<8x1xf32>
    %20 = arith.subf %19, %15 : vector<8x1xf32>
    %21 = arith.subf %5, %15 : vector<8x1xf32>
    %22 = vector.shape_cast %20 : vector<8x1xf32> to vector<8x1xf32>
    %23 = vector.broadcast %22 : vector<8x1xf32> to vector<8x2xf32>
    %24 = vector.shape_cast %21 : vector<8x1xf32> to vector<8x1xf32>
    %25 = vector.broadcast %24 : vector<8x1xf32> to vector<8x2xf32>
    %26 = arith.select %18, %23, %25 : vector<8x2xi1>, vector<8x2xf32>
    %c0_8 = arith.constant 0 : index
    %c0_9 = arith.constant 0 : index
    %27 = vector.load %arg4[%c0_8, %c0_9] : memref<8x2xf32, #tpu.memory_space<vmem>>, vector<8x2xf32>
    tpu.vector_store %arg4[%c0_8, %c0_9], %26 {strides = array<i32>} : memref<8x2xf32, #tpu.memory_space<vmem>>, vector<8x2xf32>,
    return
  }
  func.func @transform_0(%arg0: i32) -> (i32, i32) {
    %c0_i32 = arith.constant 0 : i32
    %c0_i32_0 = arith.constant 0 : i32
    return %arg0, %c0_i32 : i32, i32
  }
  func.func @transform_1(%arg0: i32) -> (i32, i32) {
    %c0_i32 = arith.constant 0 : i32
    %c0_i32_0 = arith.constant 0 : i32
    %c0_i32_1 = arith.constant 0 : i32
    return %c0_i32, %c0_i32_0 : i32, i32
  }
  func.func @transform_2(%arg0: i32) -> i32 {
    %c0_i32 = arith.constant 0 : i32
    %c0_i32_0 = arith.constant 0 : i32
    return %c0_i32 : i32
  }
  func.func @transform_3(%arg0: i32) -> (i32, i32) {
    %c0_i32 = arith.constant 0 : i32
    %c0_i32_0 = arith.constant 0 : i32
    return %arg0, %c0_i32 : i32, i32
  }
}

</mosaic_0001>

<llo_original>
// kernel: next_sentence_prediction.1
$region0: #{next_sentence_prediction.1}
  #allocation0 [shape = 'u32[]', space=smem, size = 0x4, offset = 0x4, fixed_abs, tag = 'smem constant byte address 0x4 - core index']
  #allocation1 [shape = 'u32[72,128]{1,0:T(1,128)}', space=vmem, size = 0x9000, scoped, tag = 'internal scratch']
  #allocation2 [shape = 'f32[1]{0:T(128)S(6)}', space=smem, size = 0x200, scoped, tag = 'scoped memory for next_sentence_prediction.1']
  %s0 = inlined_call_operand.vmem [shape: f32[32,1024], index: 0, kind: input, shape index: {}]
  %s1 = inlined_call_operand.vmem [shape: f32[128,1], index: 1, kind: input, shape index: {}]
  %s2 = inlined_call_operand.<no memory space> [shape: f32[1], index: 2, kind: input, shape index: {}]
  %s3 = inlined_call_operand.vmem [shape: f32[32,2], index: 3, kind: output, shape index: {}]
  %s4 = sld [smem:[#allocation0]]
  $region45: #{next_sentence_prediction.1} parent=0
    _
  %s6 = ssub.s32 1, %s4
  %s7 = scalar_select 0, %s6, %s4
  %8 = sst [smem:[#allocation2]] %s2
  loop: start=0, step=1, limit=6
  $region2: #{next_sentence_prediction.1} parent=0 // loop_pre_header
    _
  $region3: #{next_sentence_prediction.1} parent=0 // loop_header
    %s10 = sphi 0, %s14
    %p11 = scmp.ge.s32.totalorder %s10, 6
    %s20 = sphi 0, %s22
    %s23 = sphi 0, %s20
    %s24 = sphi 0, %s23
    %s40 = sphi 0, %s24
    %s44 = sphi 0, %s44
    %s46 = sphi 0, %s44
    %s47 = sphi 0, %s46
    %s61 = sphi 0, %s47
    %s65 = sphi 0, %s65
    %s67 = sphi 0, %s65
    %s68 = sphi 0, %s67
    %s82 = sphi 0, %s68
    %s88 = sphi 0, %s90
    %s91 = sphi 0, %s88
    %s92 = sphi 0, %s91
    %s108 = sphi 0, %s92
  $region4: #{next_sentence_prediction.1} parent=0 // loop_header_branch
    %13 = sbr.rel (%p11) target = $region8
  $region5: #{next_sentence_prediction.1} parent=0 // loop_body
    %s15 = ssub.s32 %s10, 1
    %s16 = ssub.s32 %s10, 2
    %s17 = sadd.s32 %s10, 1
    %s18 = ssub.s32 %s10, %s17
    %p19 = scmp.eq.s32.totalorder %s18, 0
    %s21 = sadd.s32 %s20, 1
    %s22 = scalar_select %p19, %s20, %s21
    %p25 = pneg %p19
    %p26 = scmp.eq.s32.totalorder %s10, 3
    %p27 = por %p25, %p26
    %p28 = scmp.ne.s32.totalorder %s20, %s23
    %p29 = scmp.eq.s32.totalorder %s10, 0
    %p30 = por %p28, %p29
    %p31 = scmp.ne.s32.totalorder %s20, %s23
    %p32 = scmp.eq.s32.totalorder %s15, 3
    %p33 = por %p31, %p32
    %p34 = scmp.ne.s32.totalorder %s23, %s24
    %p35 = scmp.eq.s32.totalorder %s15, 0
    %p36 = por %p34, %p35
    %p37 = scmp.ne.s32.totalorder %s23, %s24
    %p38 = scmp.eq.s32.totalorder %s16, 3
    %p39 = por %p37, %p38
    %p41 = scmp.ne.s32.totalorder %s24, %s40
    %p42 = scmp.eq.s32.totalorder %s16, 0
    %p43 = por %p41, %p42
    %s45 = sadd.s32 %s44, 1
    %p48 = scmp.eq.s32.totalorder %s10, 3
    %p49 = scmp.ne.s32.totalorder %s44, %s46
    %p50 = scmp.eq.s32.totalorder %s10, 0
    %p51 = por %p49, %p50
    %p52 = scmp.ne.s32.totalorder %s44, %s46
    %p53 = scmp.eq.s32.totalorder %s15, 3
    %p54 = por %p52, %p53
    %p55 = scmp.ne.s32.totalorder %s46, %s47
    %p56 = scmp.eq.s32.totalorder %s15, 0
    %p57 = por %p55, %p56
    %p58 = scmp.ne.s32.totalorder %s46, %s47
    %p59 = scmp.eq.s32.totalorder %s16, 3
    %p60 = por %p58, %p59
    %p62 = scmp.ne.s32.totalorder %s47, %s61
    %p63 = scmp.eq.s32.totalorder %s16, 0
    %p64 = por %p62, %p63
    %s66 = sadd.s32 %s65, 1
    %p69 = scmp.eq.s32.totalorder %s10, 3
    %p70 = scmp.ne.s32.totalorder %s65, %s67
    %p71 = scmp.eq.s32.totalorder %s10, 0
    %p72 = por %p70, %p71
    %p73 = scmp.ne.s32.totalorder %s65, %s67
    %p74 = scmp.eq.s32.totalorder %s15, 3
    %p75 = por %p73, %p74
    %p76 = scmp.ne.s32.totalorder %s67, %s68
    %p77 = scmp.eq.s32.totalorder %s15, 0
    %p78 = por %p76, %p77
    %p79 = scmp.ne.s32.totalorder %s67, %s68
    %p80 = scmp.eq.s32.totalorder %s16, 3
    %p81 = por %p79, %p80
    %p83 = scmp.ne.s32.totalorder %s68, %s82
    %p84 = scmp.eq.s32.totalorder %s16, 0
    %p85 = por %p83, %p84
    %s86 = ssub.s32 %s10, %s17
    %p87 = scmp.eq.s32.totalorder %s86, 0
    %s89 = sadd.s32 %s88, 1
    %s90 = scalar_select %p87, %s88, %s89
    %p93 = pneg %p87
    %p94 = scmp.eq.s32.totalorder %s10, 3
    %p95 = por %p93, %p94
    %p96 = scmp.ne.s32.totalorder %s88, %s91
    %p97 = scmp.eq.s32.totalorder %s10, 0
    %p98 = por %p96, %p97
    %p99 = scmp.ne.s32.totalorder %s88, %s91
    %p100 = scmp.eq.s32.totalorder %s15, 3
    %p101 = por %p99, %p100
    %p102 = scmp.ne.s32.totalorder %s91, %s92
    %p103 = scmp.eq.s32.totalorder %s15, 0
    %p104 = por %p102, %p103
    %p105 = scmp.ne.s32.totalorder %s91, %s92
    %p106 = scmp.eq.s32.totalorder %s16, 3
    %p107 = por %p105, %p106
    %p109 = scmp.ne.s32.totalorder %s92, %s108
    %p110 = scmp.eq.s32.totalorder %s16, 0
    %p111 = por %p109, %p110
    %p112 = scmp.le.s32.totalorder 1, %s10
    %p113 = scmp.lt.s32.totalorder %s10, 5
    %p114 = pnand %p112, %p113
    %p115 = pneg %p114
    // Predicated region
    $region9: #{next_sentence_prediction.1} parent=5 // pred_check
      _
    $region10: #{next_sentence_prediction.1} parent=5 // pred_check_branch
      %117 = sbr.rel (%p114) target = $region12
    $region11: #{next_sentence_prediction.1} parent=5 // pred_region
      %s118 = ssub.s32 %s10, 1
      // Predicated region
      $region13: #{next_sentence_prediction.1} parent=11 // pred_check
        %p119 = pneg %p57
      $region14: #{next_sentence_prediction.1} parent=11 // pred_check_branch
        %121 = sbr.rel (%p119) target = $region16
      $region15: #{next_sentence_prediction.1} parent=11 // pred_region
        _
      $region16: #{next_sentence_prediction.1} parent=11 // pred_fallthru
        _
      // Predicated region
      $region17: #{next_sentence_prediction.1} parent=11 // pred_check
        %p122 = pneg %p78
      $region18: #{next_sentence_prediction.1} parent=11 // pred_check_branch
        %124 = sbr.rel (%p122) target = $region20
      $region19: #{next_sentence_prediction.1} parent=11 // pred_region
        _
      $region20: #{next_sentence_prediction.1} parent=11 // pred_fallthru
        _
    $region12: #{next_sentence_prediction.1} parent=5 // pred_fallthru
      _
    %p125 = scmp.lt.s32.totalorder %s10, 4
    // Predicated region
    $region21: #{next_sentence_prediction.1} parent=5 // pred_check
      %p126 = pneg %p125
    $region22: #{next_sentence_prediction.1} parent=5 // pred_check_branch
      %128 = sbr.rel (%p126) target = $region24
    $region23: #{next_sentence_prediction.1} parent=5 // pred_region
      // Predicated region
      $region25: #{next_sentence_prediction.1} parent=23 // pred_check
        %p129 = pneg %p30
      $region26: #{next_sentence_prediction.1} parent=23 // pred_check_branch
        %131 = sbr.rel (%p129) target = $region28
      $region27: #{next_sentence_prediction.1} parent=23 // pred_region
        %p132 = scmp.lt.s32.totalorder %s10, 3
        %s133 = scalar_select %p132, %s10, 3
        %s134 = smul.addr %s133, 8
        %s135 = smul.addr %s134, 8
        %s136 = scalar_lea.vmem %s0, %s135
      $region28: #{next_sentence_prediction.1} parent=23 // pred_fallthru
        _
    $region24: #{next_sentence_prediction.1} parent=5 // pred_fallthru
      _
    %p137 = scmp.le.s32.totalorder 1, %s10
    %p138 = scmp.lt.s32.totalorder %s10, 5
    %p139 = pnand %p137, %p138
    %p140 = pneg %p139
    // Predicated region
    $region29: #{next_sentence_prediction.1} parent=5 // pred_check
      _
    $region30: #{next_sentence_prediction.1} parent=5 // pred_check_branch
      %142 = sbr.rel (%p139) target = $region32
    $region31: #{next_sentence_prediction.1} parent=5 // pred_region
      %s143 = ssub.s32 %s10, 1
      %p144 = scmp.lt.s32.totalorder %s15, 3
      %s145 = scalar_select %p144, %s15, 3
      %s146 = smul.addr %s145, 8
      %s147 = smul.addr %s146, 8
      %s148 = scalar_lea.vmem %s0, %s147
      %p149 = pneg %p36
      %p150 = pneg %p33
      %p151 = pneg %p57
      %p152 = pneg %p54
      %p153 = pneg %p78
      %p154 = pneg %p75
      %p155 = pneg %p104
      %p156 = pneg %p101
      %p157 = scmp.lt.s32.totalorder %s15, 3
      %s158 = scalar_select %p157, %s15, 3
      %s159 = smul.addr %s158, 8
      %s160 = scalar_lea.vmem %s3, %s159
      %p161 = scmp.lt.s32.totalorder %s15, 3
      %s162 = scalar_select %p161, %s15, 3
      %s163 = smul.addr %s162, 8
      %s164 = smul.addr %s163, 8
      %s165 = scalar_lea.vmem %s0, %s164
      %p166 = scmp.lt.s32.totalorder %s15, 3
      %s167 = scalar_select %p166, %s15, 3
      %s168 = smul.addr %s167, 8
      %s169 = scalar_lea.vmem %s3, %s168
      %v170 = vld [vmem:[%s165] sm:$0xff]
      %v171 = vld [vmem:[%s1] sm:$0xff]
      %v172 = vld [vmem:[%s1 + $0x8] sm:$0xff]
      %v173 = vld [vmem:[%s1 + $0x10] sm:$0xff]
      %v174 = vld [vmem:[%s1 + $0x18] sm:$0xff]
      %v175 = vld [vmem:[%s1 + $0x20] sm:$0xff]
      %v176 = vld [vmem:[%s1 + $0x28] sm:$0xff]
      %v177 = vld [vmem:[%s1 + $0x30] sm:$0xff]
      %v178 = vld [vmem:[%s1 + $0x38] sm:$0xff]
      %v179 = vld [vmem:[%s1 + $0x40] sm:$0xff]
      %v180 = vld [vmem:[%s1 + $0x48] sm:$0xff]
      %v181 = vld [vmem:[%s1 + $0x50] sm:$0xff]
      %v182 = vld [vmem:[%s1 + $0x58] sm:$0xff]
      %v183 = vld [vmem:[%s1 + $0x60] sm:$0xff]
      %v184 = vld [vmem:[%s1 + $0x68] sm:$0xff]
      %v185 = vld [vmem:[%s1 + $0x70] sm:$0xff]
      %v186 = vld [vmem:[%s1 + $0x78] sm:$0xff]
      %s187 = sld [smem:[#allocation2]]
      %v188 = vstv %s187
      %189 = vmatpush.msra.mxu0 %v186
      %190 = vmatpush.msra.mxu0 %v185
      %191 = vmatpush.msra.mxu0 %v184
      %192 = vmatpush.msra.mxu0 %v183
      %193 = vmatpush.msra.mxu0 %v182
      %194 = vmatpush.msra.mxu0 %v181
      %195 = vmatpush.msra.mxu0 %v180
      %196 = vmatpush.msra.mxu0 %v179
      %197 = vmatpush.msra.mxu0 %v178
      %198 = vmatpush.msra.mxu0 %v177
      %199 = vmatpush.msra.mxu0 %v176
      %200 = vmatpush.msra.mxu0 %v175
      %201 = vmatpush.msra.mxu0 %v174
      %202 = vmatpush.msra.mxu0 %v173
      %203 = vmatpush.msra.mxu0 %v172
      %204 = vmatpush.msra.mxu0 %v171
      %205 = vmatmul.f32.gmra.mxu0 %v170
      %v206 = vpop.f32.mrf.mxu0
      %v207 = vadd.f32 %v188, %v206
      %208 = vdwg.mxu0
      %v209 = vmax.f32 %v207, 0.0
      %v210 = vand.u32 2147483647, %v207
      %v211 = vsub.f32 0.0, %v210
      %v212 = vmul.f32 %v211, 1.442695
      %v213 = vpow.pop %v212
      %v214 = vadd.f32 %v213, 1.0
      %v215 = vlog2.pop %v214
      %v216 = vmul.f32 %v215, 0.6931472
      %v217 = vadd.f32 %v209, %v216
      %v218 = vlaneseq
      %v219 = vand.u32 %v218, 127
      %vm220 = vcmp.eq.s32.totalorder %v219, 0
      %v221 = vsub.f32 0.0, %v217
      %v222 = vsub.f32 %v207, %v217
      %224 = vset.pattern.permute.xlu0 0
      %225 = vperm.xlu0 %224, %v221
      %v226 = vpop.permute.xlu0 %225
      %229 = vset.pattern.permute.xlu0 0
      %230 = vperm.xlu0 %229, %v222
      %v231 = vpop.permute.xlu0 %230
      %v233 = vsel %vm220, %v226, %v231
      %vm234 = vcmask 15360
      %235 = vst.msk [vmem:[%s169] sm:$0xff] %vm234, %v233
      %p236 = scmp.lt.s32.totalorder %s15, 3
      %s237 = scalar_select %p236, %s15, 3
      %s238 = smul.addr %s237, 8
      %s239 = scalar_lea.vmem %s3, %s238
      // Predicated region
      $region33: #{next_sentence_prediction.1} parent=31 // pred_check
        %p240 = pneg %p101
      $region34: #{next_sentence_prediction.1} parent=31 // pred_check_branch
        %242 = sbr.rel (%p240) target = $region36
      $region35: #{next_sentence_prediction.1} parent=31 // pred_region
        _
      $region36: #{next_sentence_prediction.1} parent=31 // pred_fallthru
        _
    $region32: #{next_sentence_prediction.1} parent=5 // pred_fallthru
      _
    %p243 = scmp.le.s32.totalorder 2, %s10
    // Predicated region
    $region37: #{next_sentence_prediction.1} parent=5 // pred_check
      %p244 = pneg %p243
    $region38: #{next_sentence_prediction.1} parent=5 // pred_check_branch
      %246 = sbr.rel (%p244) target = $region40
    $region39: #{next_sentence_prediction.1} parent=5 // pred_region
      %s247 = ssub.s32 %s10, 2
      // Predicated region
      $region41: #{next_sentence_prediction.1} parent=39 // pred_check
        %p248 = pneg %p107
      $region42: #{next_sentence_prediction.1} parent=39 // pred_check_branch
        %250 = sbr.rel (%p248) target = $region44
      $region43: #{next_sentence_prediction.1} parent=39 // pred_region
        %p251 = scmp.lt.s32.totalorder %s16, 3
        %s252 = scalar_select %p251, %s16, 3
        %s253 = smul.addr %s252, 8
        %s254 = scalar_lea.vmem %s3, %s253
      $region44: #{next_sentence_prediction.1} parent=39 // pred_fallthru
        _
    $region40: #{next_sentence_prediction.1} parent=5 // pred_fallthru
      _
  $region6: #{next_sentence_prediction.1} parent=0 // loop_footer
    %s14 = sadd.s32 1, %s10
  $region7: #{next_sentence_prediction.1} parent=0 // loop_footer_branch
    %9 = sbr.rel target = $region3
  $region8: #{next_sentence_prediction.1} parent=0 // loop_exit
    _

</llo_original>
